<compile_context>
chip_gen: v7x
topology: tpu7x:2x2x1
jax: 0.10.0
libtpu: 0.0.40
codegen_flags: <defaults>
</compile_context>

<pallas_src>
import functools

import jax
import jax.numpy as jnp
from jax.experimental import pallas as pl
from jax.experimental.pallas import tpu as pltpu

LANES = 128
TILE_SUB = 8                    # f32 sublane tile -> (8, 128) accumulator planes
TARGET_TILE_BYTES = 1 << 20     # ~1 MiB of input per operand per grid step


def _num_tensorcores():
    """Best-effort TensorCore count (2 on v7x, 1 on v5e/v6e)."""
    # TODO(synk): if TpuInfo exposes no core-count field on this jax version we
    # conservatively fall back to 1 TC, giving up the 2-TC split on v7x.
    try:
        info = pltpu.get_tpu_info()
    except Exception:
        return 1
    for attr in ("num_cores", "num_tensorcores", "tensorcore_count",
                 "cores_per_chip", "num_cores_per_chip"):
        val = getattr(info, attr, None)
        if isinstance(val, int) and val >= 1:
            return min(2, val)
    return 1


def _msedice_sums_kernel(nrows_ref, x_ref, t_ref, acc_ref):
    """Accumulate four partial-sum planes for one (tile_rows, 128) tile.

    acc_ref is a (1, 4, 8, 128) f32 block, VMEM-resident across the inner
    ("arbitrary") grid axis:
      acc[0] += (sigmoid(x) - t)^2    acc[1] += sigmoid(x) * t
      acc[2] += sigmoid(x)            acc[3] += t
    """
    c = pl.program_id(0)
    i = pl.program_id(1)

    @pl.when(i == 0)
    def _():
        acc_ref[...] = jnp.zeros_like(acc_ref)

    tile_rows = x_ref.shape[0]
    tile_idx = c * pl.num_programs(1) + i
    nrows = nrows_ref[0]

    def fold(v):
        # In-tile reduction (tile_rows, 128) -> (8, 128): the reshape splits
        # whole vregs off the sublane-major axis, so this is pure VPU adds.
        # TODO(synk): if VALU is still the binding slot on v7x, move this fold
        # to the MXU via a constant selection-matrix matmul.
        if tile_rows == TILE_SUB:
            return v
        return jnp.sum(v.reshape(tile_rows // TILE_SUB, TILE_SUB, LANES),
                       axis=0)

    def accumulate(p, t):
        d = p - t
        acc_ref[0, 0] += fold(d * d)
        acc_ref[0, 1] += fold(p * t)
        acc_ref[0, 2] += fold(p)
        acc_ref[0, 3] += fold(t)

    # Fast path: this tile lies entirely inside the valid rows (all interior
    # tiles). No iota / compare / select at all.
    is_full = (tile_idx + 1) * tile_rows <= nrows

    @pl.when(is_full)
    def _():
        x = x_ref[...].astype(jnp.float32)
        t = t_ref[...].astype(jnp.float32)
        p = 0.5 * (jnp.tanh(0.5 * x) + 1.0)     # sigmoid via a single EUP op
        accumulate(p, t)

    # Slow path: the tail tile (rows past nrows are garbage from the partial
    # block read) or a fully-masked clamped duplicate tile from the core
    # split. Mask by global row only: one sublane iota + one compare.
    @pl.when(jnp.logical_not(is_full))
    def _():
        row_ids = jax.lax.broadcasted_iota(jnp.int32, (tile_rows, LANES), 0)
        valid = (tile_idx * tile_rows + row_ids) < nrows
        x = x_ref[...].astype(jnp.float32)
        t = jnp.where(valid, t_ref[...].astype(jnp.float32), 0.0)
        p = jnp.where(valid, 0.5 * (jnp.tanh(0.5 * x) + 1.0), 0.0)
        accumulate(p, t)


def _partial_sums(x2, t2, rows):
    """Stream (rows, 128) operands; return (num_cores, 4, 8, 128) sum planes."""
    itemsize = jnp.dtype(x2.dtype).itemsize
    max_tile_rows = max(
        TILE_SUB,
        (TARGET_TILE_BYTES // (LANES * itemsize)) // TILE_SUB * TILE_SUB)
    rows_rounded = pl.cdiv(rows, TILE_SUB) * TILE_SUB
    tile_rows = min(max_tile_rows, rows_rounded)
    tiles = pl.cdiv(rows, tile_rows)

    num_cores = min(_num_tensorcores(), tiles)
    inner = pl.cdiv(tiles, num_cores)
    last_tile = tiles - 1

    def in_map(c, i, nrows):
        # Clamp so out-of-range (c, i) pairs re-read the last valid tile; their
        # contribution is fully masked out in the kernel's slow path.
        return (jnp.minimum(c * inner + i, last_tile), 0)

    if num_cores > 1:
        core_sem = getattr(pltpu, "CORE_PARALLEL", "parallel")
    else:
        core_sem = "arbitrary"

    nrows_arr = jnp.asarray([rows], dtype=jnp.int32)
    return pl.pallas_call(
        _msedice_sums_kernel,
        out_shape=jax.ShapeDtypeStruct((num_cores, 4, TILE_SUB, LANES),
                                       jnp.float32),
        grid_spec=pltpu.PrefetchScalarGridSpec(
            num_scalar_prefetch=1,
            grid=(num_cores, inner),
            in_specs=[
                pl.BlockSpec((tile_rows, LANES), in_map),
                pl.BlockSpec((tile_rows, LANES), in_map),
            ],
            out_specs=pl.BlockSpec((1, 4, TILE_SUB, LANES),
                                   lambda c, i, nrows: (c, 0, 0, 0)),
        ),
        compiler_params=pltpu.CompilerParams(
            dimension_semantics=(core_sem, "arbitrary"),
            vmem_limit_bytes=32 * 1024 * 1024),
    )(nrows_arr, x2, t2)


@functools.partial(jax.jit, static_argnames=("gamma",))
def mse_dice_loss(inp, target, gamma=0.5):
    """JAX/Pallas equivalent of MSEDiceLoss.forward (weight is unused there)."""
    n = inp.size
    x = inp.reshape(-1)
    t = target.reshape(-1)

    n_main = (n // LANES) * LANES
    rows = n_main // LANES

    if rows > 0:
        if n_main != n:
            # TODO(synk): the prefix slice still costs one HBM copy for
            # lane-misaligned inputs; a manual-DMA 1-D kernel would avoid it.
            x2 = x[:n_main].reshape(rows, LANES)
            t2 = t[:n_main].reshape(rows, LANES)
        else:
            x2 = x.reshape(rows, LANES)
            t2 = t.reshape(rows, LANES)
        acc = _partial_sums(x2, t2, rows)       # (num_cores, 4, 8, 128)
        sums = jnp.sum(acc, axis=(0, 2, 3))     # (4,)
    else:
        sums = jnp.zeros((4,), jnp.float32)

    if n_main != n:
        # <128-element lane-misaligned remainder: reduce in plain JAX.
        xr = x[n_main:].astype(jnp.float32)
        tr = t[n_main:].astype(jnp.float32)
        pr = jax.nn.sigmoid(xr)
        dr = pr - tr
        sums = sums + jnp.stack(
            [jnp.sum(dr * dr), jnp.sum(pr * tr), jnp.sum(pr), jnp.sum(tr)])

    sq_sum, pt_sum, p_sum, t_sum = sums[0], sums[1], sums[2], sums[3]
    mse_loss = sq_sum / jnp.float32(n)
    smooth = jnp.float32(1e-8)
    # TODO(synk): PyTorch computes the dice sums in float64; TPU Pallas
    # accumulates in float32 here (lane-distributed partial sums keep relative
    # error ~1e-6).
    dice_coef = 2.0 * (pt_sum + smooth) / (p_sum + t_sum + smooth)
    return (1.0 - gamma) * mse_loss + (1.0 - dice_coef) * gamma


def _reference(inp, target, gamma=0.5):
    pred = jax.nn.sigmoid(inp.astype(jnp.float32)).reshape(-1)
    truth = target.astype(jnp.float32).reshape(-1)
    mse = jnp.mean((pred - truth) ** 2)
    smooth = 1e-8
    dice = 2.0 * (jnp.sum(pred * truth) + smooth) / (
        jnp.sum(pred) + jnp.sum(truth) + smooth)
    return (1.0 - gamma) * mse + (1.0 - dice) * gamma


if __name__ == "__main__":
    key = jax.random.PRNGKey(0)
    k1, k2, k3, k4 = jax.random.split(key, 4)

    # NCHW segmentation logits vs. binary mask (lane-aligned case: fast path).
    x = jax.random.normal(k1, (2, 4, 16, 16), dtype=jnp.float32)
    tgt = (jax.random.uniform(k2, (2, 4, 16, 16)) > 0.5).astype(jnp.float32)
    loss = mse_dice_loss(x, tgt, gamma=0.5)
    jax.block_until_ready(loss)
    ref = _reference(x, tgt, gamma=0.5)
    assert jnp.allclose(loss, ref, rtol=1e-5, atol=1e-5), (loss, ref)

    # Lane-misaligned case (row-masked tail tile + plain-JAX remainder).
    x2 = jax.random.normal(k3, (2, 3, 17, 19), dtype=jnp.float32)
    tgt2 = (jax.random.uniform(k4, (2, 3, 17, 19)) > 0.5).astype(jnp.float32)
    loss2 = mse_dice_loss(x2, tgt2, gamma=0.5)
    jax.block_until_ready(loss2)
    ref2 = _reference(x2, tgt2, gamma=0.5)
    assert jnp.allclose(loss2, ref2, rtol=1e-5, atol=1e-5), (loss2, ref2)

    print("KERNEL_OK")
</pallas_src>

<mosaic_0001>
module attributes {stable_mosaic.version = 11 : i64} {
  func.func @_msedice_sums_kernel(%arg0: i32, %arg1: i32, %arg2: memref<1xi32, #tpu.memory_space<smem>>, %arg3: memref<16x128xf32, #tpu.memory_space<vmem>>, %arg4: memref<16x128xf32, #tpu.memory_space<vmem>>, %arg5: memref<1x4x8x128xf32, #tpu.memory_space<vmem>>) attributes {dimension_semantics = [#tpu.dimension_semantics<arbitrary>, #tpu.dimension_semantics<arbitrary>], iteration_bounds = array<i64: 1, 1>, scalar_prefetch = 1 : i64, scratch_operands = 0 : i64, tpu.core_type = #tpu.core_type<tc>, window_params = [{transform_indices = @transform_0, window_bounds = array<i64: 16, 128>}, {transform_indices = @transform_1, window_bounds = array<i64: 16, 128>}, {transform_indices = @transform_2, window_bounds = array<i64: 1, 4, 8, 128>}]} {
    %c0_i32 = arith.constant 0 : i32
    %0 = arith.cmpi eq, %arg1, %c0_i32 : i32
    %1 = arith.extui %0 : i1 to i32
    %c0_i32_0 = arith.constant 0 : i32
    %2 = arith.cmpi ne, %1, %c0_i32_0 : i32
    scf.if %2 {
      %cst = arith.constant 0.000000e+00 : f32
      %14 = vector.broadcast %cst : f32 to vector<1x4x8x128xf32>
      %c0_4 = arith.constant 0 : index
      %c0_5 = arith.constant 0 : index
      %c0_6 = arith.constant 0 : index
      %c0_7 = arith.constant 0 : index
      %15 = vector.load %arg5[%c0_4, %c0_5, %c0_6, %c0_7] : memref<1x4x8x128xf32, #tpu.memory_space<vmem>>, vector<1x4x8x128xf32>
      tpu.vector_store %arg5[%c0_4, %c0_5, %c0_6, %c0_7], %14 {strides = array<i32>} : memref<1x4x8x128xf32, #tpu.memory_space<vmem>>, vector<1x4x8x128xf32>,
    } else {
    }
    %c1_i32 = arith.constant 1 : i32
    %3 = arith.muli %arg0, %c1_i32 : i32
    %4 = arith.addi %3, %arg1 : i32
    %c0 = arith.constant 0 : index
    %5 = memref.load %arg2[%c0] : memref<1xi32, #tpu.memory_space<smem>>
    %c1_i32_1 = arith.constant 1 : i32
    %6 = arith.addi %4, %c1_i32_1 : i32
    %c16_i32 = arith.constant 16 : i32
    %7 = arith.muli %6, %c16_i32 : i32
    %8 = arith.cmpi sle, %7, %5 : i32
    %9 = arith.extui %8 : i1 to i32
    %c0_i32_2 = arith.constant 0 : i32
    %10 = arith.cmpi ne, %9, %c0_i32_2 : i32
    scf.if %10 {
      %c0_4 = arith.constant 0 : index
      %c0_5 = arith.constant 0 : index
      %14 = vector.load %arg3[%c0_4, %c0_5] : memref<16x128xf32, #tpu.memory_space<vmem>>, vector<16x128xf32>
      %c0_6 = arith.constant 0 : index
      %c0_7 = arith.constant 0 : index
      %15 = vector.load %arg4[%c0_6, %c0_7] : memref<16x128xf32, #tpu.memory_space<vmem>>, vector<16x128xf32>
      %cst = arith.constant 5.000000e-01 : f32
      %16 = vector.broadcast %cst : f32 to vector<16x128xf32>
      %17 = arith.mulf %16, %14 : vector<16x128xf32>
      %18 = math.tanh %17 : vector<16x128xf32>
      %cst_8 = arith.constant 1.000000e+00 : f32
      %19 = vector.broadcast %cst_8 : f32 to vector<16x128xf32>
      %20 = arith.addf %18, %19 : vector<16x128xf32>
      %cst_9 = arith.constant 5.000000e-01 : f32
      %21 = vector.broadcast %cst_9 : f32 to vector<16x128xf32>
      %22 = arith.mulf %21, %20 : vector<16x128xf32>
      %23 = arith.subf %22, %15 : vector<16x128xf32>
      %c0_10 = arith.constant 0 : index
      %c0_11 = arith.constant 0 : index
      %c0_12 = arith.constant 0 : index
      %c0_13 = arith.constant 0 : index
      %24 = vector.load %arg5[%c0_10, %c0_11, %c0_12, %c0_13] : memref<1x4x8x128xf32, #tpu.memory_space<vmem>>, vector<1x1x8x128xf32>
      %25 = vector.shape_cast %24 : vector<1x1x8x128xf32> to vector<8x128xf32>
      %26 = arith.mulf %23, %23 : vector<16x128xf32>
      %27 = vector.shape_cast %26 : vector<16x128xf32> to vector<2x8x128xf32>
      %cst_14 = arith.constant dense<0.000000e+00> : vector<8x128xf32>
      %28 = vector.multi_reduction <add>, %27, %cst_14 [0] : vector<2x8x128xf32> to vector<8x128xf32>
      %29 = arith.addf %25, %28 : vector<8x128xf32>
      %c0_15 = arith.constant 0 : index
      %c0_16 = arith.constant 0 : index
      %c0_17 = arith.constant 0 : index
      %c0_18 = arith.constant 0 : index
      %30 = vector.load %arg5[%c0_15, %c0_16, %c0_17, %c0_18] : memref<1x4x8x128xf32, #tpu.memory_space<vmem>>, vector<1x1x8x128xf32>
      %31 = vector.shape_cast %30 : vector<1x1x8x128xf32> to vector<8x128xf32>
      %32 = vector.shape_cast %29 : vector<8x128xf32> to vector<1x1x8x128xf32>
      tpu.vector_store %arg5[%c0_15, %c0_16, %c0_17, %c0_18], %32 {strides = array<i32>} : memref<1x4x8x128xf32, #tpu.memory_space<vmem>>, vector<1x1x8x128xf32>,
      %c0_19 = arith.constant 0 : index
      %c1 = arith.constant 1 : index
      %c0_20 = arith.constant 0 : index
      %c0_21 = arith.constant 0 : index
      %33 = vector.load %arg5[%c0_19, %c1, %c0_20, %c0_21] : memref<1x4x8x128xf32, #tpu.memory_space<vmem>>, vector<1x1x8x128xf32>
      %34 = vector.shape_cast %33 : vector<1x1x8x128xf32> to vector<8x128xf32>
      %35 = arith.mulf %22, %15 : vector<16x128xf32>
      %36 = vector.shape_cast %35 : vector<16x128xf32> to vector<2x8x128xf32>
      %cst_22 = arith.constant dense<0.000000e+00> : vector<8x128xf32>
      %37 = vector.multi_reduction <add>, %36, %cst_22 [0] : vector<2x8x128xf32> to vector<8x128xf32>
      %38 = arith.addf %34, %37 : vector<8x128xf32>
      %c0_23 = arith.constant 0 : index
      %c1_24 = arith.constant 1 : index
      %c0_25 = arith.constant 0 : index
      %c0_26 = arith.constant 0 : index
      %39 = vector.load %arg5[%c0_23, %c1_24, %c0_25, %c0_26] : memref<1x4x8x128xf32, #tpu.memory_space<vmem>>, vector<1x1x8x128xf32>
      %40 = vector.shape_cast %39 : vector<1x1x8x128xf32> to vector<8x128xf32>
      %41 = vector.shape_cast %38 : vector<8x128xf32> to vector<1x1x8x128xf32>
      tpu.vector_store %arg5[%c0_23, %c1_24, %c0_25, %c0_26], %41 {strides = array<i32>} : memref<1x4x8x128xf32, #tpu.memory_space<vmem>>, vector<1x1x8x128xf32>,
      %c0_27 = arith.constant 0 : index
      %c2 = arith.constant 2 : index
      %c0_28 = arith.constant 0 : index
      %c0_29 = arith.constant 0 : index
      %42 = vector.load %arg5[%c0_27, %c2, %c0_28, %c0_29] : memref<1x4x8x128xf32, #tpu.memory_space<vmem>>, vector<1x1x8x128xf32>
      %43 = vector.shape_cast %42 : vector<1x1x8x128xf32> to vector<8x128xf32>
      %44 = vector.shape_cast %22 : vector<16x128xf32> to vector<2x8x128xf32>
      %cst_30 = arith.constant dense<0.000000e+00> : vector<8x128xf32>
      %45 = vector.multi_reduction <add>, %44, %cst_30 [0] : vector<2x8x128xf32> to vector<8x128xf32>
      %46 = arith.addf %43, %45 : vector<8x128xf32>
      %c0_31 = arith.constant 0 : index
      %c2_32 = arith.constant 2 : index
      %c0_33 = arith.constant 0 : index
      %c0_34 = arith.constant 0 : index
      %47 = vector.load %arg5[%c0_31, %c2_32, %c0_33, %c0_34] : memref<1x4x8x128xf32, #tpu.memory_space<vmem>>, vector<1x1x8x128xf32>
      %48 = vector.shape_cast %47 : vector<1x1x8x128xf32> to vector<8x128xf32>
      %49 = vector.shape_cast %46 : vector<8x128xf32> to vector<1x1x8x128xf32>
      tpu.vector_store %arg5[%c0_31, %c2_32, %c0_33, %c0_34], %49 {strides = array<i32>} : memref<1x4x8x128xf32, #tpu.memory_space<vmem>>, vector<1x1x8x128xf32>,
      %c0_35 = arith.constant 0 : index
      %c3 = arith.constant 3 : index
      %c0_36 = arith.constant 0 : index
      %c0_37 = arith.constant 0 : index
      %50 = vector.load %arg5[%c0_35, %c3, %c0_36, %c0_37] : memref<1x4x8x128xf32, #tpu.memory_space<vmem>>, vector<1x1x8x128xf32>
      %51 = vector.shape_cast %50 : vector<1x1x8x128xf32> to vector<8x128xf32>
      %52 = vector.shape_cast %15 : vector<16x128xf32> to vector<2x8x128xf32>
      %cst_38 = arith.constant dense<0.000000e+00> : vector<8x128xf32>
      %53 = vector.multi_reduction <add>, %52, %cst_38 [0] : vector<2x8x128xf32> to vector<8x128xf32>
      %54 = arith.addf %51, %53 : vector<8x128xf32>
      %c0_39 = arith.constant 0 : index
      %c3_40 = arith.constant 3 : index
      %c0_41 = arith.constant 0 : index
      %c0_42 = arith.constant 0 : index
      %55 = vector.load %arg5[%c0_39, %c3_40, %c0_41, %c0_42] : memref<1x4x8x128xf32, #tpu.memory_space<vmem>>, vector<1x1x8x128xf32>
      %56 = vector.shape_cast %55 : vector<1x1x8x128xf32> to vector<8x128xf32>
      %57 = vector.shape_cast %54 : vector<8x128xf32> to vector<1x1x8x128xf32>
      tpu.vector_store %arg5[%c0_39, %c3_40, %c0_41, %c0_42], %57 {strides = array<i32>} : memref<1x4x8x128xf32, #tpu.memory_space<vmem>>, vector<1x1x8x128xf32>,
    } else {
    }
    %true = arith.constant true
    %11 = arith.xori %8, %true : i1
    %12 = arith.extui %11 : i1 to i32
    %c0_i32_3 = arith.constant 0 : i32
    %13 = arith.cmpi ne, %12, %c0_i32_3 : i32
    scf.if %13 {
      %14 = tpu.iota {dimensions = array<i32: 0>} : vector<16x128xi32>
      %c16_i32_4 = arith.constant 16 : i32
      %15 = arith.muli %4, %c16_i32_4 : i32
      %16 = vector.broadcast %15 : i32 to vector<16x128xi32>
      %17 = arith.addi %16, %14 : vector<16x128xi32>
      %18 = vector.broadcast %5 : i32 to vector<16x128xi32>
      %19 = arith.cmpi slt, %17, %18 : vector<16x128xi32>
      %c0_5 = arith.constant 0 : index
      %c0_6 = arith.constant 0 : index
      %20 = vector.load %arg3[%c0_5, %c0_6] : memref<16x128xf32, #tpu.memory_space<vmem>>, vector<16x128xf32>
      %c0_7 = arith.constant 0 : index
      %c0_8 = arith.constant 0 : index
      %21 = vector.load %arg4[%c0_7, %c0_8] : memref<16x128xf32, #tpu.memory_space<vmem>>, vector<16x128xf32>
      %cst = arith.constant 0.000000e+00 : f32
      %22 = vector.broadcast %cst : f32 to vector<16x128xf32>
      %23 = arith.select %19, %21, %22 : vector<16x128xi1>, vector<16x128xf32>
      %cst_9 = arith.constant 5.000000e-01 : f32
      %24 = vector.broadcast %cst_9 : f32 to vector<16x128xf32>
      %25 = arith.mulf %24, %20 : vector<16x128xf32>
      %26 = math.tanh %25 : vector<16x128xf32>
      %cst_10 = arith.constant 1.000000e+00 : f32
      %27 = vector.broadcast %cst_10 : f32 to vector<16x128xf32>
      %28 = arith.addf %26, %27 : vector<16x128xf32>
      %cst_11 = arith.constant 5.000000e-01 : f32
      %29 = vector.broadcast %cst_11 : f32 to vector<16x128xf32>
      %30 = arith.mulf %29, %28 : vector<16x128xf32>
      %cst_12 = arith.constant 0.000000e+00 : f32
      %31 = vector.broadcast %cst_12 : f32 to vector<16x128xf32>
      %32 = arith.select %19, %30, %31 : vector<16x128xi1>, vector<16x128xf32>
      %33 = arith.subf %32, %23 : vector<16x128xf32>
      %c0_13 = arith.constant 0 : index
      %c0_14 = arith.constant 0 : index
      %c0_15 = arith.constant 0 : index
      %c0_16 = arith.constant 0 : index
      %34 = vector.load %arg5[%c0_13, %c0_14, %c0_15, %c0_16] : memref<1x4x8x128xf32, #tpu.memory_space<vmem>>, vector<1x1x8x128xf32>
      %35 = vector.shape_cast %34 : vector<1x1x8x128xf32> to vector<8x128xf32>
      %36 = arith.mulf %33, %33 : vector<16x128xf32>
      %37 = vector.shape_cast %36 : vector<16x128xf32> to vector<2x8x128xf32>
      %cst_17 = arith.constant dense<0.000000e+00> : vector<8x128xf32>
      %38 = vector.multi_reduction <add>, %37, %cst_17 [0] : vector<2x8x128xf32> to vector<8x128xf32>
      %39 = arith.addf %35, %38 : vector<8x128xf32>
      %c0_18 = arith.constant 0 : index
      %c0_19 = arith.constant 0 : index
      %c0_20 = arith.constant 0 : index
      %c0_21 = arith.constant 0 : index
      %40 = vector.load %arg5[%c0_18, %c0_19, %c0_20, %c0_21] : memref<1x4x8x128xf32, #tpu.memory_space<vmem>>, vector<1x1x8x128xf32>
      %41 = vector.shape_cast %40 : vector<1x1x8x128xf32> to vector<8x128xf32>
      %42 = vector.shape_cast %39 : vector<8x128xf32> to vector<1x1x8x128xf32>
      tpu.vector_store %arg5[%c0_18, %c0_19, %c0_20, %c0_21], %42 {strides = array<i32>} : memref<1x4x8x128xf32, #tpu.memory_space<vmem>>, vector<1x1x8x128xf32>,
      %c0_22 = arith.constant 0 : index
      %c1 = arith.constant 1 : index
      %c0_23 = arith.constant 0 : index
      %c0_24 = arith.constant 0 : index
      %43 = vector.load %arg5[%c0_22, %c1, %c0_23, %c0_24] : memref<1x4x8x128xf32, #tpu.memory_space<vmem>>, vector<1x1x8x128xf32>
      %44 = vector.shape_cast %43 : vector<1x1x8x128xf32> to vector<8x128xf32>
      %45 = arith.mulf %32, %23 : vector<16x128xf32>
      %46 = vector.shape_cast %45 : vector<16x128xf32> to vector<2x8x128xf32>
      %cst_25 = arith.constant dense<0.000000e+00> : vector<8x128xf32>
      %47 = vector.multi_reduction <add>, %46, %cst_25 [0] : vector<2x8x128xf32> to vector<8x128xf32>
      %48 = arith.addf %44, %47 : vector<8x128xf32>
      %c0_26 = arith.constant 0 : index
      %c1_27 = arith.constant 1 : index
      %c0_28 = arith.constant 0 : index
      %c0_29 = arith.constant 0 : index
      %49 = vector.load %arg5[%c0_26, %c1_27, %c0_28, %c0_29] : memref<1x4x8x128xf32, #tpu.memory_space<vmem>>, vector<1x1x8x128xf32>
      %50 = vector.shape_cast %49 : vector<1x1x8x128xf32> to vector<8x128xf32>
      %51 = vector.shape_cast %48 : vector<8x128xf32> to vector<1x1x8x128xf32>
      tpu.vector_store %arg5[%c0_26, %c1_27, %c0_28, %c0_29], %51 {strides = array<i32>} : memref<1x4x8x128xf32, #tpu.memory_space<vmem>>, vector<1x1x8x128xf32>,
      %c0_30 = arith.constant 0 : index
      %c2 = arith.constant 2 : index
      %c0_31 = arith.constant 0 : index
      %c0_32 = arith.constant 0 : index
      %52 = vector.load %arg5[%c0_30, %c2, %c0_31, %c0_32] : memref<1x4x8x128xf32, #tpu.memory_space<vmem>>, vector<1x1x8x128xf32>
      %53 = vector.shape_cast %52 : vector<1x1x8x128xf32> to vector<8x128xf32>
      %54 = vector.shape_cast %32 : vector<16x128xf32> to vector<2x8x128xf32>
      %cst_33 = arith.constant dense<0.000000e+00> : vector<8x128xf32>
      %55 = vector.multi_reduction <add>, %54, %cst_33 [0] : vector<2x8x128xf32> to vector<8x128xf32>
      %56 = arith.addf %53, %55 : vector<8x128xf32>
      %c0_34 = arith.constant 0 : index
      %c2_35 = arith.constant 2 : index
      %c0_36 = arith.constant 0 : index
      %c0_37 = arith.constant 0 : index
      %57 = vector.load %arg5[%c0_34, %c2_35, %c0_36, %c0_37] : memref<1x4x8x128xf32, #tpu.memory_space<vmem>>, vector<1x1x8x128xf32>
      %58 = vector.shape_cast %57 : vector<1x1x8x128xf32> to vector<8x128xf32>
      %59 = vector.shape_cast %56 : vector<8x128xf32> to vector<1x1x8x128xf32>
      tpu.vector_store %arg5[%c0_34, %c2_35, %c0_36, %c0_37], %59 {strides = array<i32>} : memref<1x4x8x128xf32, #tpu.memory_space<vmem>>, vector<1x1x8x128xf32>,
      %c0_38 = arith.constant 0 : index
      %c3 = arith.constant 3 : index
      %c0_39 = arith.constant 0 : index
      %c0_40 = arith.constant 0 : index
      %60 = vector.load %arg5[%c0_38, %c3, %c0_39, %c0_40] : memref<1x4x8x128xf32, #tpu.memory_space<vmem>>, vector<1x1x8x128xf32>
      %61 = vector.shape_cast %60 : vector<1x1x8x128xf32> to vector<8x128xf32>
      %62 = vector.shape_cast %23 : vector<16x128xf32> to vector<2x8x128xf32>
      %cst_41 = arith.constant dense<0.000000e+00> : vector<8x128xf32>
      %63 = vector.multi_reduction <add>, %62, %cst_41 [0] : vector<2x8x128xf32> to vector<8x128xf32>
      %64 = arith.addf %61, %63 : vector<8x128xf32>
      %c0_42 = arith.constant 0 : index
      %c3_43 = arith.constant 3 : index
      %c0_44 = arith.constant 0 : index
      %c0_45 = arith.constant 0 : index
      %65 = vector.load %arg5[%c0_42, %c3_43, %c0_44, %c0_45] : memref<1x4x8x128xf32, #tpu.memory_space<vmem>>, vector<1x1x8x128xf32>
      %66 = vector.shape_cast %65 : vector<1x1x8x128xf32> to vector<8x128xf32>
      %67 = vector.shape_cast %64 : vector<8x128xf32> to vector<1x1x8x128xf32>
      tpu.vector_store %arg5[%c0_42, %c3_43, %c0_44, %c0_45], %67 {strides = array<i32>} : memref<1x4x8x128xf32, #tpu.memory_space<vmem>>, vector<1x1x8x128xf32>,
    } else {
    }
    return
  }
  func.func @transform_0(%arg0: i32, %arg1: i32, %arg2: memref<1xi32, #tpu.memory_space<smem>>) -> (i32, i32) {
    %c1_i32 = arith.constant 1 : i32
    %0 = arith.muli %arg0, %c1_i32 : i32
    %1 = arith.addi %0, %arg1 : i32
    %c0_i32 = arith.constant 0 : i32
    %2 = arith.minsi %1, %c0_i32 : i32
    %c0_i32_0 = arith.constant 0 : i32
    %c0_i32_1 = arith.constant 0 : i32
    return %2, %c0_i32_0 : i32, i32
  }
  func.func @transform_1(%arg0: i32, %arg1: i32, %arg2: memref<1xi32, #tpu.memory_space<smem>>) -> (i32, i32) {
    %c1_i32 = arith.constant 1 : i32
    %0 = arith.muli %arg0, %c1_i32 : i32
    %1 = arith.addi %0, %arg1 : i32
    %c0_i32 = arith.constant 0 : i32
    %2 = arith.minsi %1, %c0_i32 : i32
    %c0_i32_0 = arith.constant 0 : i32
    %c0_i32_1 = arith.constant 0 : i32
    return %2, %c0_i32_0 : i32, i32
  }
  func.func @transform_2(%arg0: i32, %arg1: i32, %arg2: memref<1xi32, #tpu.memory_space<smem>>) -> (i32, i32, i32, i32) {
    %c0_i32 = arith.constant 0 : i32
    %c0_i32_0 = arith.constant 0 : i32
    %c0_i32_1 = arith.constant 0 : i32
    %c0_i32_2 = arith.constant 0 : i32
    return %arg0, %c0_i32, %c0_i32_0, %c0_i32_1 : i32, i32, i32, i32
  }
}

</mosaic_0001>

<llo_original>
// kernel: mse_dice_loss.1
$region0: #{mse_dice_loss.1}
  #allocation0 [shape = 'u32[]', space=smem, size = 0x4, offset = 0x4, fixed_abs, tag = 'smem constant byte address 0x4 - core index']
  #allocation1 [shape = 'u32[144,128]{1,0:T(1,128)}', space=vmem, size = 0x12000, scoped, tag = 'internal scratch']
  #allocation2 [shape = 's32[1]{0}', space=sflag, size = 0x4, scoped, tag = 'scoped memory for mse_dice_loss.1']
  #allocation3 [shape = 's32[1]{0:T(128)S(6)}', space=smem, size = 0x200, scoped, tag = 'prefetched SMEM operand 0']
  %s0 = inlined_call_operand.<no memory space> [shape: s32[1], index: 0, kind: input, shape index: {}]
  %s1 = inlined_call_operand.vmem [shape: f32[16,128], index: 1, kind: input, shape index: {}]
  %s2 = inlined_call_operand.vmem [shape: f32[16,128], index: 2, kind: input, shape index: {}]
  %s3 = inlined_call_operand.vmem [shape: f32[1,4,8,128], index: 3, kind: output, shape index: {}]
  %s4 = sld [smem:[#allocation0]]
  $region30: #{mse_dice_loss.1} parent=0
    _
  %s6 = ssub.s32 1, %s4
  %s7 = scalar_select 0, %s6, %s4
  %8 = sst [smem:[#allocation3]] %s0
  // Predicated region
  $region2: #{mse_dice_loss.1} parent=0 // pred_check
    _
  $region3: #{mse_dice_loss.1} parent=0 // pred_check_branch
    %10 = sbr.rel (0) target = $region5
  $region4: #{mse_dice_loss.1} parent=0 // pred_region
    %s11 = sadd.s32 0, 0
    %p12 = scmp.lt.s32.totalorder %s11, 0
    %s13 = scalar_select %p12, %s11, 0
    %s14 = smul.u32 2, %s13
    %p15 = scmp.lt.s32.totalorder %s14, 1
    %s16 = scalar_select %p15, %s14, 1
    %s17 = smul.addr %s16, 8
    %s18 = scalar_lea.vmem %s1, %s17
    %s19 = sadd.s32 0, 0
    %p20 = scmp.lt.s32.totalorder %s19, 0
    %s21 = scalar_select %p20, %s19, 0
    %s22 = smul.u32 2, %s21
  $region5: #{mse_dice_loss.1} parent=0 // pred_fallthru
    _
  // Predicated region
  $region6: #{mse_dice_loss.1} parent=0 // pred_check
    _
  $region7: #{mse_dice_loss.1} parent=0 // pred_check_branch
    %24 = sbr.rel (0) target = $region9
  $region8: #{mse_dice_loss.1} parent=0 // pred_region
    %s25 = sadd.s32 0, 0
    %p26 = scmp.lt.s32.totalorder %s25, 0
    %s27 = scalar_select %p26, %s25, 0
    %s28 = smul.u32 2, %s27
    %p29 = scmp.lt.s32.totalorder %s28, 1
    %s30 = scalar_select %p29, %s28, 1
    %s31 = smul.addr %s30, 8
    %s32 = scalar_lea.vmem %s2, %s31
    %s33 = sadd.s32 0, 0
    %p34 = scmp.lt.s32.totalorder %s33, 0
    %s35 = scalar_select %p34, %s33, 0
    %s36 = smul.u32 2, %s35
  $region9: #{mse_dice_loss.1} parent=0 // pred_fallthru
    _
  %s37 = sadd.s32 0, 0
  %p38 = scmp.lt.s32.totalorder %s37, 0
  %s39 = scalar_select %p38, %s37, 0
  %s40 = smul.u32 2, %s39
  %p41 = scmp.lt.s32.totalorder %s40, 1
  %s42 = scalar_select %p41, %s40, 1
  %s43 = smul.addr %s42, 8
  %s44 = scalar_lea.vmem %s1, %s43
  %s45 = sadd.s32 0, 0
  %p46 = scmp.lt.s32.totalorder %s45, 0
  %s47 = scalar_select %p46, %s45, 0
  %s48 = smul.u32 2, %s47
  %p49 = scmp.lt.s32.totalorder %s48, 1
  %s50 = scalar_select %p49, %s48, 1
  %s51 = smul.addr %s50, 8
  %s52 = scalar_lea.vmem %s2, %s51
  %s53 = sadd.s32 0, 0
  %p54 = scmp.lt.s32.totalorder %s53, 0
  %s55 = scalar_select %p54, %s53, 0
  %s56 = smul.u32 2, %s55
  %p57 = scmp.lt.s32.totalorder %s56, 1
  %s58 = scalar_select %p57, %s56, 1
  %s59 = smul.addr %s58, 8
  %s60 = scalar_lea.vmem %s1, %s59
  %s61 = sadd.s32 0, 0
  %p62 = scmp.lt.s32.totalorder %s61, 0
  %s63 = scalar_select %p62, %s61, 0
  %s64 = smul.u32 2, %s63
  %s65 = sadd.s32 0, 0
  %p66 = scmp.lt.s32.totalorder %s65, 0
  %s67 = scalar_select %p66, %s65, 0
  %s68 = smul.u32 2, %s67
  %p69 = scmp.lt.s32.totalorder %s68, 1
  %s70 = scalar_select %p69, %s68, 1
  %s71 = smul.addr %s70, 8
  %s72 = scalar_lea.vmem %s2, %s71
  %s73 = sadd.s32 0, 0
  %p74 = scmp.lt.s32.totalorder %s73, 0
  %s75 = scalar_select %p74, %s73, 0
  %s76 = smul.u32 2, %s75
  %p77 = scmp.eq.s32.totalorder 0, 0
  // Predicated region
  $region10: #{mse_dice_loss.1} parent=0 // pred_check
    %p78 = pneg %p77
  $region11: #{mse_dice_loss.1} parent=0 // pred_check_branch
    %80 = sbr.rel (%p78) target = $region13
  $region12: #{mse_dice_loss.1} parent=0 // pred_region
    %81 = vst [vmem:[%s3] sm:$0xff] 0.0
    %82 = vst [vmem:[%s3 + $0x8] sm:$0xff] 0.0
    %83 = vst [vmem:[%s3 + $0x10] sm:$0xff] 0.0
    %84 = vst [vmem:[%s3 + $0x18] sm:$0xff] 0.0
  $region13: #{mse_dice_loss.1} parent=0 // pred_fallthru
    _
  %s85 = sadd.s32 0, 0
  %s86 = sld [smem:[#allocation3]]
  %s87 = sadd.s32 %s85, 1
  %s88 = smul.u32 %s87, 16
  %p89 = scmp.le.s32.totalorder %s88, %s86
  // Predicated region
  $region14: #{mse_dice_loss.1} parent=0 // pred_check
    %p90 = pneg %p89
  $region15: #{mse_dice_loss.1} parent=0 // pred_check_branch
    %92 = sbr.rel (%p90) target = $region17
  $region16: #{mse_dice_loss.1} parent=0 // pred_region
    %v93 = vld [vmem:[%s60] sm:$0xff]
    %v94 = vld [vmem:[%s60 + $0x8] sm:$0xff]
    %v95 = vld [vmem:[%s72] sm:$0xff]
    %v96 = vld [vmem:[%s72 + $0x8] sm:$0xff]
    %v97 = vmul.f32 %v93, 0.5
    %v98 = vmul.f32 %v94, 0.5
    %v99 = vtanh.pop %v97
    %v100 = vtanh.pop %v98
    %v101 = vadd.f32 %v99, 1.0
    %v102 = vadd.f32 %v100, 1.0
    %v103 = vmul.f32 %v101, 0.5
    %v104 = vmul.f32 %v102, 0.5
    %v105 = vsub.f32 %v103, %v95
    %v106 = vsub.f32 %v104, %v96
    %v107 = vld [vmem:[%s3] sm:$0xff]
    %v108 = vmul.f32 %v105, %v105
    %v109 = vmul.f32 %v106, %v106
    %v110 = vadd.f32 %v108, %v109
    %v111 = vadd.f32 %v107, %v110
    %112 = vst [vmem:[%s3] sm:$0xff] %v111
    %s113 = scalar_lea.vmem %s3, 8
    %v114 = vld [vmem:[%s113] sm:$0xff]
    %v115 = vmul.f32 %v103, %v95
    %v116 = vmul.f32 %v104, %v96
    %v117 = vadd.f32 %v115, %v116
    %v118 = vadd.f32 %v114, %v117
    %119 = vst [vmem:[%s113] sm:$0xff] %v118
    %s120 = scalar_lea.vmem %s3, 16
    %v121 = vld [vmem:[%s120] sm:$0xff]
    %v122 = vadd.f32 %v103, %v104
    %v123 = vadd.f32 %v121, %v122
    %124 = vst [vmem:[%s120] sm:$0xff] %v123
    %s125 = scalar_lea.vmem %s3, 24
    %v126 = vld [vmem:[%s125] sm:$0xff]
    %v127 = vadd.f32 %v95, %v96
    %v128 = vadd.f32 %v126, %v127
    %129 = vst [vmem:[%s125] sm:$0xff] %v128
  $region17: #{mse_dice_loss.1} parent=0 // pred_fallthru
    _
  %p130 = scmp.gt.s32.totalorder %s88, %s86
  // Predicated region
  $region18: #{mse_dice_loss.1} parent=0 // pred_check
    %p131 = pneg %p130
  $region19: #{mse_dice_loss.1} parent=0 // pred_check_branch
    %133 = sbr.rel (%p131) target = $region21
  $region20: #{mse_dice_loss.1} parent=0 // pred_region
    %v134 = vlaneseq
    %v135 = vshrl.u32 %v134, 7
    %v136 = vadd.s32 %v135, 8
    %s137 = smul.u32 %s85, 16
    %v138 = vstv %s137
    %v139 = vadd.s32 %v138, %v135
    %v140 = vadd.s32 %v138, %v136
    %v141 = vstv %s86
    %vm142 = vcmp.lt.s32.totalorder %v139, %v141
    %vm143 = vcmp.lt.s32.totalorder %v140, %v141
    %v144 = vld [vmem:[%s60] sm:$0xff]
    %v145 = vld [vmem:[%s60 + $0x8] sm:$0xff]
    %v146 = vld [vmem:[%s72] sm:$0xff]
    %v147 = vld [vmem:[%s72 + $0x8] sm:$0xff]
    %v148 = vsel %vm142, %v146, 0.0
    %v149 = vsel %vm143, %v147, 0.0
    %v150 = vmul.f32 %v144, 0.5
    %v151 = vmul.f32 %v145, 0.5
    %v152 = vtanh.pop %v150
    %v153 = vtanh.pop %v151
    %v154 = vadd.f32 %v152, 1.0
    %v155 = vadd.f32 %v153, 1.0
    %v156 = vmul.f32 %v154, 0.5
    %v157 = vmul.f32 %v155, 0.5
    %v158 = vsel %vm142, %v156, 0.0
    %v159 = vsel %vm143, %v157, 0.0
    %v160 = vsub.f32 %v158, %v148
    %v161 = vsub.f32 %v159, %v149
    %v162 = vld [vmem:[%s3] sm:$0xff]
    %v163 = vmul.f32 %v160, %v160
    %v164 = vmul.f32 %v161, %v161
    %v165 = vadd.f32 %v163, %v164
    %v166 = vadd.f32 %v162, %v165
    %167 = vst [vmem:[%s3] sm:$0xff] %v166
    %s168 = scalar_lea.vmem %s3, 8
    %v169 = vld [vmem:[%s168] sm:$0xff]
    %v170 = vmul.f32 %v158, %v148
    %v171 = vmul.f32 %v159, %v149
    %v172 = vadd.f32 %v170, %v171
    %v173 = vadd.f32 %v169, %v172
    %174 = vst [vmem:[%s168] sm:$0xff] %v173
    %s175 = scalar_lea.vmem %s3, 16
    %v176 = vld [vmem:[%s175] sm:$0xff]
    %v177 = vadd.f32 %v158, %v159
    %v178 = vadd.f32 %v176, %v177
    %179 = vst [vmem:[%s175] sm:$0xff] %v178
    %s180 = scalar_lea.vmem %s3, 24
    %v181 = vld [vmem:[%s180] sm:$0xff]
    %v182 = vadd.f32 %v148, %v149
    %v183 = vadd.f32 %v181, %v182
    %184 = vst [vmem:[%s180] sm:$0xff] %v183
  $region21: #{mse_dice_loss.1} parent=0 // pred_fallthru
    _
  // Predicated region
  $region22: #{mse_dice_loss.1} parent=0 // pred_check
    _
  $region23: #{mse_dice_loss.1} parent=0 // pred_check_branch
    %186 = sbr.rel (0) target = $region25
  $region24: #{mse_dice_loss.1} parent=0 // pred_region
    _
  $region25: #{mse_dice_loss.1} parent=0 // pred_fallthru
    _
  // Predicated region
  $region26: #{mse_dice_loss.1} parent=0 // pred_check
    _
  $region27: #{mse_dice_loss.1} parent=0 // pred_check_branch
    %188 = sbr.rel (0) target = $region29
  $region28: #{mse_dice_loss.1} parent=0 // pred_region
    _
  $region29: #{mse_dice_loss.1} parent=0 // pred_fallthru
    _

</llo_original>
